<compile_context>
chip_gen: v5e
topology: v5e:2x2
jax: 0.10.0
libtpu: 0.0.40
codegen_flags: <defaults>
</compile_context>

<pallas_src>
import functools

import jax
import jax.numpy as jnp
from jax import lax
from jax.experimental import pallas as pl
from jax.experimental.pallas import tpu as pltpu

BN_EPS = 1e-5                      # torch BatchNorm default eps
_VMEM_LIMIT = 64 * 1024 * 1024     # explicit scoped-VMEM budget


# --------------------------------------------------------------------------
# helpers
# --------------------------------------------------------------------------
def _pick_tile(dim, target, multiple):
    """Largest tile <= target that divides `dim` and is a multiple of
    `multiple`; falls back to the full dim (a full block is always legal)."""
    if dim <= target:
        return dim
    t = (target // multiple) * multiple
    while t >= multiple:
        if dim % t == 0:
            return t
        t -= multiple
    return dim


# --------------------------------------------------------------------------
# Kernel 1: tiled matmul + folded-BN + ReLU   (linear layer and plain 1x1 convs)
# --------------------------------------------------------------------------
def _matmul_bn_relu_kernel(x_ref, w_ref, scale_ref, shift_ref, o_ref, acc_ref,
                           *, relu):
    @pl.when(pl.program_id(2) == 0)
    def _():
        acc_ref[...] = jnp.zeros_like(acc_ref)

    acc_ref[...] += jnp.dot(x_ref[...], w_ref[...],
                            preferred_element_type=jnp.float32)

    @pl.when(pl.program_id(2) == pl.num_programs(2) - 1)
    def _():
        y = acc_ref[...] * scale_ref[...] + shift_ref[...]
        if relu:
            y = jnp.maximum(y, 0.0)
        o_ref[...] = y.astype(o_ref.dtype)


def matmul_bn_relu(x, w, scale, shift, *, relu=True, tm=256, tn=256, tk=512):
    """(M, K) @ (K, N)  ->  relu((x @ w) * scale + shift), all fused."""
    m, k = x.shape
    k2, n = w.shape
    assert k == k2
    tm = _pick_tile(m, tm, 8)
    tn = _pick_tile(n, tn, 128)
    tk = _pick_tile(k, tk, 128)
    grid = (m // tm, n // tn, k // tk)
    return pl.pallas_call(
        functools.partial(_matmul_bn_relu_kernel, relu=relu),
        grid=grid,
        in_specs=[
            pl.BlockSpec((tm, tk), lambda i, j, kk: (i, kk)),
            pl.BlockSpec((tk, tn), lambda i, j, kk: (kk, j)),
            pl.BlockSpec((1, tn), lambda i, j, kk: (0, j)),
            pl.BlockSpec((1, tn), lambda i, j, kk: (0, j)),
        ],
        out_specs=pl.BlockSpec((tm, tn), lambda i, j, kk: (i, j)),
        out_shape=jax.ShapeDtypeStruct((m, n), x.dtype),
        scratch_shapes=[pltpu.VMEM((tm, tn), jnp.float32)],
        compiler_params=pltpu.CompilerParams(
            dimension_semantics=("parallel", "parallel", "arbitrary"),
            vmem_limit_bytes=_VMEM_LIMIT),
    )(x, w, scale.reshape(1, n), shift.reshape(1, n))


# --------------------------------------------------------------------------
# Kernel 2: f1_v_proj (1x1) + BN + ReLU  ->  * state  ->  norm_layer BN + ReLU
# All fused into one kernel; the gate is per-(batch, out-channel).
# --------------------------------------------------------------------------
def _conv1x1_gated_kernel(x_ref, w_ref, s1_ref, b1_ref, g_ref, s2_ref, b2_ref,
                          o_ref, acc_ref):
    @pl.when(pl.program_id(2) == 0)
    def _():
        acc_ref[...] = jnp.zeros_like(acc_ref)

    acc_ref[...] += jnp.dot(x_ref[0], w_ref[...],
                            preferred_element_type=jnp.float32)

    @pl.when(pl.program_id(2) == pl.num_programs(2) - 1)
    def _():
        y = jnp.maximum(acc_ref[...] * s1_ref[...] + b1_ref[...], 0.0)  # conv BN+ReLU
        y = y * g_ref[0]                                                # * state (per batch)
        y = jnp.maximum(y * s2_ref[...] + b2_ref[...], 0.0)             # norm_layer BN+ReLU
        o_ref[0] = y.astype(o_ref.dtype)


def conv1x1_gated_bn_relu(x_nhwc, state, p_proj, p_norm,
                          *, tn_target=256, tk_target=512):
    b, h, w, cin = x_nhwc.shape
    wgt = p_proj["w"]                        # (cin, cout)
    cout = wgt.shape[-1]
    hw = h * w
    tn = _pick_tile(cout, tn_target, 128)
    tk = _pick_tile(cin, tk_target, 128)

    x = x_nhwc.reshape(b, hw, cin)
    gate = state.reshape(b, 1, cout)
    out = pl.pallas_call(
        _conv1x1_gated_kernel,
        grid=(b, cout // tn, cin // tk),
        in_specs=[
            pl.BlockSpec((1, hw, tk), lambda bb, j, kk: (bb, 0, kk)),
            pl.BlockSpec((tk, tn), lambda bb, j, kk: (kk, j)),
            pl.BlockSpec((1, tn), lambda bb, j, kk: (0, j)),
            pl.BlockSpec((1, tn), lambda bb, j, kk: (0, j)),
            pl.BlockSpec((1, 1, tn), lambda bb, j, kk: (bb, 0, j)),
            pl.BlockSpec((1, tn), lambda bb, j, kk: (0, j)),
            pl.BlockSpec((1, tn), lambda bb, j, kk: (0, j)),
        ],
        out_specs=pl.BlockSpec((1, hw, tn), lambda bb, j, kk: (bb, 0, j)),
        out_shape=jax.ShapeDtypeStruct((b, hw, cout), x_nhwc.dtype),
        scratch_shapes=[pltpu.VMEM((hw, tn), jnp.float32)],
        compiler_params=pltpu.CompilerParams(
            dimension_semantics=("parallel", "parallel", "arbitrary"),
            vmem_limit_bytes=_VMEM_LIMIT),
    )(x, wgt,
      p_proj["scale"].reshape(1, cout), p_proj["shift"].reshape(1, cout),
      gate,
      p_norm["scale"].reshape(1, cout), p_norm["shift"].reshape(1, cout))
    return out.reshape(b, h, w, cout)


# --------------------------------------------------------------------------
# Kernel 3: fused 3x3 conv (pad=1, stride=1, bias=False) + folded-BN + ReLU
# --------------------------------------------------------------------------
def _conv3x3_bn_relu_kernel(x_ref, w_ref, scale_ref, shift_ref, o_ref, *, H, W):
    # x_ref: (1, (H+2)*W, 3*Cin)  -- width taps packed on the lane axis
    # w_ref: (3, 3*Cin, tn)       -- one (3*Cin, tn) weight slab per height tap
    tn = o_ref.shape[-1]
    acc = jnp.zeros((H * W, tn), jnp.float32)
    for dy in range(3):                        # accumulate the 3 height taps
        tap = x_ref[0, dy * W:dy * W + H * W, :]
        acc = acc + jnp.dot(tap, w_ref[dy],
                            preferred_element_type=jnp.float32)
    y = acc * scale_ref[...] + shift_ref[...]
    o_ref[0] = jnp.maximum(y, 0.0).astype(o_ref.dtype)


def conv3x3_bn_relu(x_nhwc, p, *, tn_target=256):
    b, h, w, cin = x_nhwc.shape
    wgt = p["w"]                               # (3, 3, cin, cout)
    cout = wgt.shape[-1]
    tn = _pick_tile(cout, tn_target, 128)

    # pad spatially, pack the 3 width taps onto the channel (lane) axis.
    # TODO(synk): for very large feature maps, tile the spatial rows (halo'd
    # row bands) instead of holding the full packed image per batch in VMEM.
    xp = jnp.pad(x_nhwc, ((0, 0), (1, 1), (1, 1), (0, 0)))
    xcol = jnp.concatenate([xp[:, :, d:d + w, :] for d in range(3)], axis=-1)
    xcol = xcol.reshape(b, (h + 2) * w, 3 * cin)
    wcol = wgt.reshape(3, 3 * cin, cout)       # (dy, dx-major*cin, cout)

    out = pl.pallas_call(
        functools.partial(_conv3x3_bn_relu_kernel, H=h, W=w),
        grid=(b, cout // tn),
        in_specs=[
            pl.BlockSpec((1, (h + 2) * w, 3 * cin), lambda bb, j: (bb, 0, 0)),
            pl.BlockSpec((3, 3 * cin, tn), lambda bb, j: (0, 0, j)),
            pl.BlockSpec((1, tn), lambda bb, j: (0, j)),
            pl.BlockSpec((1, tn), lambda bb, j: (0, j)),
        ],
        out_specs=pl.BlockSpec((1, h * w, tn), lambda bb, j: (bb, 0, j)),
        out_shape=jax.ShapeDtypeStruct((b, h * w, cout), x_nhwc.dtype),
        compiler_params=pltpu.CompilerParams(
            dimension_semantics=("parallel", "parallel"),
            vmem_limit_bytes=_VMEM_LIMIT),
    )(xcol, wcol, p["scale"].reshape(1, cout), p["shift"].reshape(1, cout))
    return out.reshape(b, h, w, cout)


# --------------------------------------------------------------------------
# Plain-JAX glue (cheap data movement)
# TODO(synk): bilinear upsample / avg-pool / concat / coord-grid stay in JAX;
# they are pure data movement and could be folded into the conv kernels later.
# --------------------------------------------------------------------------
def _upsample2x_bilinear_nhwc(x):
    # matches F.interpolate(scale_factor=2, mode="bilinear", align_corners=False)
    b, h, w, c = x.shape
    lo = jnp.concatenate([x[:, :1], x[:, :-1]], axis=1)
    hi = jnp.concatenate([x[:, 1:], x[:, -1:]], axis=1)
    even = 0.25 * lo + 0.75 * x
    odd = 0.75 * x + 0.25 * hi
    x = jnp.stack([even, odd], axis=2).reshape(b, 2 * h, w, c)
    lo = jnp.concatenate([x[:, :, :1], x[:, :, :-1]], axis=2)
    hi = jnp.concatenate([x[:, :, 1:], x[:, :, -1:]], axis=2)
    even = 0.25 * lo + 0.75 * x
    odd = 0.75 * x + 0.25 * hi
    return jnp.stack([even, odd], axis=3).reshape(b, 2 * h, 2 * w, c)


def _avg_pool2x2_nhwc(x):
    b, h, w, c = x.shape
    return x.reshape(b, h // 2, 2, w // 2, 2, c).mean(axis=(2, 4))


def _coord_features(b, h, w, dtype):
    xs = jnp.linspace(-1.0, 1.0, w, dtype=dtype)
    ys = jnp.linspace(-1.0, 1.0, h, dtype=dtype)
    x_map = jnp.broadcast_to(xs[None, None, :, None], (b, h, w, 1))
    y_map = jnp.broadcast_to(ys[None, :, None, None], (b, h, w, 1))
    return jnp.concatenate([x_map, y_map], axis=-1)   # torch order: [x, y]


# --------------------------------------------------------------------------
# FPN forward (imgs = (v3, v4, v5) in NCHW, state = (B, in_channels[2]))
# --------------------------------------------------------------------------
def fpn_forward(params, imgs, state):
    v3, v4, v5 = (jnp.transpose(v, (0, 2, 3, 1)) for v in imgs)   # -> NHWC
    b, h4, w4, _ = v4.shape

    # state = txt_proj(state): Linear(no bias) + BN1d + ReLU
    p = params["txt_proj"]
    state = matmul_bn_relu(state, p["w"], p["scale"], p["shift"])

    # f5 = norm_layer(f1_v_proj(v5) * state)  -- one fully fused kernel
    f5 = conv1x1_gated_bn_relu(v5, state,
                               params["f1_v_proj"], params["norm_layer"])

    # f4 = f2_cat(cat([f2_v_proj(v4), upsample2x(f5)]))
    f4 = conv3x3_bn_relu(v4, params["f2_v_proj"])
    f5_up = _upsample2x_bilinear_nhwc(f5)
    p = params["f2_cat"]
    f4 = matmul_bn_relu(
        jnp.concatenate([f4, f5_up], axis=-1).reshape(b * h4 * w4, -1),
        p["w"], p["scale"], p["shift"]).reshape(b, h4, w4, -1)

    # f3 = f3_cat(cat([avg_pool2x2(f3_v_proj(v3)), f4]))
    f3 = conv3x3_bn_relu(v3, params["f3_v_proj"])
    f3 = _avg_pool2x2_nhwc(f3)
    p = params["f3_cat"]
    f3 = matmul_bn_relu(
        jnp.concatenate([f3, f4], axis=-1).reshape(b * h4 * w4, -1),
        p["w"], p["scale"], p["shift"]).reshape(b, h4, w4, -1)

    # fq = aggr(cat([fq3, fq4, upsample2x(fq5)]))
    fq5 = conv3x3_bn_relu(f5, params["f4_proj5"])
    fq4 = conv3x3_bn_relu(f4, params["f4_proj4"])
    fq3 = conv3x3_bn_relu(f3, params["f4_proj3"])
    fq5 = _upsample2x_bilinear_nhwc(fq5)
    p = params["aggr"]
    fq = matmul_bn_relu(
        jnp.concatenate([fq3, fq4, fq5], axis=-1).reshape(b * h4 * w4, -1),
        p["w"], p["scale"], p["shift"]).reshape(b, h4, w4, -1)

    # coordconv: CoordConv(3x3 over [fq, x, y]) then conv_layer(3x3)
    coord = _coord_features(b, h4, w4, fq.dtype)
    fq = conv3x3_bn_relu(jnp.concatenate([fq, coord], axis=-1),
                         params["coord_conv1"])
    fq = conv3x3_bn_relu(fq, params["coord_conv2"])

    return jnp.transpose(fq, (0, 3, 1, 2))     # NHWC -> NCHW


# --------------------------------------------------------------------------
# Deterministic parameter construction (inference-mode BN folded to scale/shift)
# --------------------------------------------------------------------------
def _fold_bn(key, c):
    kg, kb, km, kv = jax.random.split(key, 4)
    gamma = 1.0 + 0.1 * jax.random.normal(kg, (c,), jnp.float32)
    beta = 0.1 * jax.random.normal(kb, (c,), jnp.float32)
    mean = 0.1 * jax.random.normal(km, (c,), jnp.float32)
    var = 1.0 + 0.1 * jnp.abs(jax.random.normal(kv, (c,), jnp.float32))
    scale = gamma * jax.lax.rsqrt(var + BN_EPS)
    shift = beta - mean * scale
    return scale, shift


def _make_conv1x1(key, cin, cout):          # also used for the linear layer
    kw, kbn = jax.random.split(key)
    w = 0.05 * jax.random.normal(kw, (cin, cout), jnp.float32)
    scale, shift = _fold_bn(kbn, cout)
    return {"w": w, "scale": scale, "shift": shift}


def _make_conv3x3(key, cin, cout):
    kw, kbn = jax.random.split(key)
    w = 0.05 * jax.random.normal(kw, (3, 3, cin, cout), jnp.float32)
    scale, shift = _fold_bn(kbn, cout)
    return {"w": w, "scale": scale, "shift": shift}


def _make_bn(key, c):
    scale, shift = _fold_bn(key, c)
    return {"scale": scale, "shift": shift}


def make_fpn_params(key, in_channels, out_channels):
    c3, c4, c5 = in_channels
    o3, o4, o5 = out_channels
    ks = jax.random.split(key, 13)
    return {
        "txt_proj":    _make_conv1x1(ks[0], c5, o5),
        "f1_v_proj":   _make_conv1x1(ks[1], c5, o5),
        "norm_layer":  _make_bn(ks[2], o5),
        "f2_v_proj":   _make_conv3x3(ks[3], c4, o4),
        "f2_cat":      _make_conv1x1(ks[4], o4 + o5, o4),
        "f3_v_proj":   _make_conv3x3(ks[5], c3, o3),
        "f3_cat":      _make_conv1x1(ks[6], o3 + o4, o4),
        "f4_proj5":    _make_conv3x3(ks[7], o5, o4),
        "f4_proj4":    _make_conv3x3(ks[8], o4, o4),
        "f4_proj3":    _make_conv3x3(ks[9], o4, o4),
        "aggr":        _make_conv1x1(ks[10], 3 * o4, o4),
        "coord_conv1": _make_conv3x3(ks[11], o4 + 2, o4),
        "coord_conv2": _make_conv3x3(ks[12], o4, o4),
    }


# --------------------------------------------------------------------------
if __name__ == "__main__":
    B = 2
    IN_CHANNELS = (32, 64, 64)      # (c3, c4, c5)   -- (512, 1024, 1024) in CRIS
    OUT_CHANNELS = (16, 32, 64)     # (o3, o4, o5)   -- (256, 512, 1024)  in CRIS
    H3, W3 = 16, 16                 # v3 at stride 8
    H4, W4 = 8, 8                   # v4 at stride 16
    H5, W5 = 4, 4                   # v5 at stride 32

    key = jax.random.PRNGKey(0)
    kp, k3, k4, k5, ks = jax.random.split(key, 5)
    params = make_fpn_params(kp, IN_CHANNELS, OUT_CHANNELS)
    v3 = jax.random.normal(k3, (B, IN_CHANNELS[0], H3, W3), jnp.float32)
    v4 = jax.random.normal(k4, (B, IN_CHANNELS[1], H4, W4), jnp.float32)
    v5 = jax.random.normal(k5, (B, IN_CHANNELS[2], H5, W5), jnp.float32)
    state = jax.random.normal(ks, (B, IN_CHANNELS[2]), jnp.float32)

    # ---- lightweight per-kernel correctness checks vs. plain-JAX refs ----
    # 1) linear_layer kernel
    pt = params["txt_proj"]
    st = matmul_bn_relu(state, pt["w"], pt["scale"], pt["shift"])
    st_ref = jnp.maximum((state @ pt["w"]) * pt["scale"] + pt["shift"], 0.0)
    assert bool(jnp.allclose(st, st_ref, rtol=2e-2, atol=2e-2))

    # 2) fused f1_v_proj + gate + norm_layer kernel
    v5_nhwc = jnp.transpose(v5, (0, 2, 3, 1))
    pp, pn = params["f1_v_proj"], params["norm_layer"]
    f5 = conv1x1_gated_bn_relu(v5_nhwc, st, pp, pn)
    f5_ref = jnp.maximum(
        jnp.einsum("bhwc,cd->bhwd", v5_nhwc, pp["w"]) * pp["scale"] + pp["shift"], 0.0)
    f5_ref = jnp.maximum(
        f5_ref * st_ref[:, None, None, :] * pn["scale"] + pn["shift"], 0.0)
    assert bool(jnp.allclose(f5, f5_ref, rtol=2e-2, atol=2e-2))

    # 3) 3x3 conv kernel
    v4_nhwc = jnp.transpose(v4, (0, 2, 3, 1))
    pc = params["f2_v_proj"]
    c_got = conv3x3_bn_relu(v4_nhwc, pc)
    c_ref = lax.conv_general_dilated(
        v4_nhwc, pc["w"], (1, 1), "SAME",
        dimension_numbers=("NHWC", "HWIO", "NHWC"))
    c_ref = jnp.maximum(c_ref * pc["scale"] + pc["shift"], 0.0)
    assert bool(jnp.allclose(c_got, c_ref, rtol=2e-2, atol=2e-2))

    # ---- full forward pass ----
    fwd = jax.jit(fpn_forward)
    out = jax.block_until_ready(fwd(params, (v3, v4, v5), state))

    assert out.shape == (B, OUT_CHANNELS[1], H4, W4), out.shape
    assert bool(jnp.all(jnp.isfinite(out)))
    print("KERNEL_OK")
</pallas_src>

<mosaic_0001>
module attributes {stable_mosaic.version = 11 : i64} {
  func.func @_matmul_bn_relu_kernel(%arg0: i32, %arg1: i32, %arg2: i32, %arg3: memref<2x64xf32, #tpu.memory_space<vmem>>, %arg4: memref<64x64xf32, #tpu.memory_space<vmem>>, %arg5: memref<1x64xf32, #tpu.memory_space<vmem>>, %arg6: memref<1x64xf32, #tpu.memory_space<vmem>>, %arg7: memref<2x64xf32, #tpu.memory_space<vmem>>, %arg8: memref<2x64xf32, #tpu.memory_space<vmem>>) attributes {dimension_semantics = [#tpu.dimension_semantics<parallel>, #tpu.dimension_semantics<parallel>, #tpu.dimension_semantics<arbitrary>], iteration_bounds = array<i64: 1, 1, 1>, scalar_prefetch = 0 : i64, scratch_operands = 1 : i64, tpu.core_type = #tpu.core_type<tc>, window_params = [{transform_indices = @transform_0, window_bounds = array<i64: 2, 64>}, {transform_indices = @transform_1, window_bounds = array<i64: 64, 64>}, {transform_indices = @transform_2, window_bounds = array<i64: 1, 64>}, {transform_indices = @transform_3, window_bounds = array<i64: 1, 64>}, {transform_indices = @transform_4, window_bounds = array<i64: 2, 64>}]} {
    %c0_i32 = arith.constant 0 : i32
    %0 = arith.cmpi eq, %arg2, %c0_i32 : i32
    %1 = arith.extui %0 : i1 to i32
    %c0_i32_0 = arith.constant 0 : i32
    %2 = arith.cmpi ne, %1, %c0_i32_0 : i32
    scf.if %2 {
      %cst_10 = arith.constant 0.000000e+00 : f32
      %12 = vector.broadcast %cst_10 : f32 to vector<2x64xf32>
      %c0_11 = arith.constant 0 : index
      %c0_12 = arith.constant 0 : index
      %13 = vector.load %arg8[%c0_11, %c0_12] : memref<2x64xf32, #tpu.memory_space<vmem>>, vector<2x64xf32>
      tpu.vector_store %arg8[%c0_11, %c0_12], %12 {strides = array<i32>} : memref<2x64xf32, #tpu.memory_space<vmem>>, vector<2x64xf32>,
    } else {
    }
    %c0 = arith.constant 0 : index
    %c0_1 = arith.constant 0 : index
    %3 = vector.load %arg8[%c0, %c0_1] : memref<2x64xf32, #tpu.memory_space<vmem>>, vector<2x64xf32>
    %c0_2 = arith.constant 0 : index
    %c0_3 = arith.constant 0 : index
    %4 = vector.load %arg3[%c0_2, %c0_3] : memref<2x64xf32, #tpu.memory_space<vmem>>, vector<2x64xf32>
    %c0_4 = arith.constant 0 : index
    %c0_5 = arith.constant 0 : index
    %5 = vector.load %arg4[%c0_4, %c0_5] : memref<64x64xf32, #tpu.memory_space<vmem>>, vector<64x64xf32>
    %cst = arith.constant dense<0.000000e+00> : vector<2x64xf32>
    %6 = tpu.matmul %4, %5, %cst {dimension_numbers = #tpu.dot_dimension_numbers<[1], [0], [0], [1], [0, 0, 1, 1], [], []>} : vector<2x64xf32>, vector<64x64xf32>, vector<2x64xf32> -> vector<2x64xf32>
    %7 = arith.addf %3, %6 : vector<2x64xf32>
    %c0_6 = arith.constant 0 : index
    %c0_7 = arith.constant 0 : index
    %8 = vector.load %arg8[%c0_6, %c0_7] : memref<2x64xf32, #tpu.memory_space<vmem>>, vector<2x64xf32>
    tpu.vector_store %arg8[%c0_6, %c0_7], %7 {strides = array<i32>} : memref<2x64xf32, #tpu.memory_space<vmem>>, vector<2x64xf32>,
    %c0_i32_8 = arith.constant 0 : i32
    %9 = arith.cmpi eq, %arg2, %c0_i32_8 : i32
    %10 = arith.extui %9 : i1 to i32
    %c0_i32_9 = arith.constant 0 : i32
    %11 = arith.cmpi ne, %10, %c0_i32_9 : i32
    scf.if %11 {
      %c0_10 = arith.constant 0 : index
      %c0_11 = arith.constant 0 : index
      %12 = vector.load %arg8[%c0_10, %c0_11] : memref<2x64xf32, #tpu.memory_space<vmem>>, vector<2x64xf32>
      %c0_12 = arith.constant 0 : index
      %c0_13 = arith.constant 0 : index
      %13 = vector.load %arg5[%c0_12, %c0_13] : memref<1x64xf32, #tpu.memory_space<vmem>>, vector<1x64xf32>
      %14 = vector.broadcast %13 : vector<1x64xf32> to vector<2x64xf32>
      %15 = arith.mulf %12, %14 : vector<2x64xf32>
      %c0_14 = arith.constant 0 : index
      %c0_15 = arith.constant 0 : index
      %16 = vector.load %arg6[%c0_14, %c0_15] : memref<1x64xf32, #tpu.memory_space<vmem>>, vector<1x64xf32>
      %17 = vector.broadcast %16 : vector<1x64xf32> to vector<2x64xf32>
      %18 = arith.addf %15, %17 : vector<2x64xf32>
      %cst_16 = arith.constant 0.000000e+00 : f32
      %19 = vector.broadcast %cst_16 : f32 to vector<2x64xf32>
      %20 = arith.maximumf %18, %19 : vector<2x64xf32>
      %c0_17 = arith.constant 0 : index
      %c0_18 = arith.constant 0 : index
      %21 = vector.load %arg7[%c0_17, %c0_18] : memref<2x64xf32, #tpu.memory_space<vmem>>, vector<2x64xf32>
      tpu.vector_store %arg7[%c0_17, %c0_18], %20 {strides = array<i32>} : memref<2x64xf32, #tpu.memory_space<vmem>>, vector<2x64xf32>,
    } else {
    }
    return
  }
  func.func @transform_0(%arg0: i32, %arg1: i32, %arg2: i32) -> (i32, i32) {
    %c0_i32 = arith.constant 0 : i32
    return %arg0, %arg2 : i32, i32
  }
  func.func @transform_1(%arg0: i32, %arg1: i32, %arg2: i32) -> (i32, i32) {
    %c0_i32 = arith.constant 0 : i32
    return %arg2, %arg1 : i32, i32
  }
  func.func @transform_2(%arg0: i32, %arg1: i32, %arg2: i32) -> (i32, i32) {
    %c0_i32 = arith.constant 0 : i32
    %c0_i32_0 = arith.constant 0 : i32
    return %c0_i32, %arg1 : i32, i32
  }
  func.func @transform_3(%arg0: i32, %arg1: i32, %arg2: i32) -> (i32, i32) {
    %c0_i32 = arith.constant 0 : i32
    %c0_i32_0 = arith.constant 0 : i32
    return %c0_i32, %arg1 : i32, i32
  }
  func.func @transform_4(%arg0: i32, %arg1: i32, %arg2: i32) -> (i32, i32) {
    %c0_i32 = arith.constant 0 : i32
    return %arg0, %arg1 : i32, i32
  }
}

</mosaic_0001>

<llo_original>
// kernel: tpu_custom_call.1
$region0: #{tpu_custom_call.1}
  #allocation0 [shape = 'u32[]', space=smem, size = 0x4, offset = 0x4, fixed_abs, tag = 'smem constant byte address 0x4 - core index']
  #allocation1 [shape = 'u32[72,128]{1,0:T(1,128)}', space=vmem, size = 0x9000, scoped, tag = 'internal scratch']
  #allocation2 [shape = 'f32[2,64]{1,0:T(2,128)}', space=vmem, size = 0x400, scoped, tag = 'scratch operand']
  %s0 = inlined_call_operand.hbm [shape: f32[2,64], index: 0, kind: input, shape index: {}]
  %s1 = inlined_call_operand.hbm [shape: f32[64,64], index: 1, kind: input, shape index: {}]
  %s2 = inlined_call_operand.vmem [shape: f32[1,64], index: 2, kind: input, shape index: {}]
  %s3 = inlined_call_operand.vmem [shape: f32[1,64], index: 3, kind: input, shape index: {}]
  %s4 = inlined_call_operand.hbm [shape: f32[2,64], index: 4, kind: output, shape index: {}]
  %s5 = sld [smem:[#allocation0]]
  $region42: #{tpu_custom_call.1} parent=0
    _
  %s7 = ssub.s32 1, %s5
  %s8 = scalar_select 0, %s7, %s5
  $region1: #{tpu_custom_call.1} parent=0
    #allocation3 [shape = 'u8[1024]{0}', space=vmem, size = 0x400, scoped, tag = 'input window, operand 0, single buffered']
    #allocation4 [shape = 's32[1]{0}', space=sflag, size = 0x4, scoped, tag = 'scoped memory for tpu_custom_call.1']
    #allocation5 [shape = 's32[1]{0}', space=sflag, size = 0x4, scoped, tag = 'scoped memory for tpu_custom_call.1']
    #allocation6 [shape = 'u8[32768]{0}', space=vmem, size = 0x8000, scoped, tag = 'input window, operand 1, single buffered']
    #allocation7 [shape = 's32[1]{0}', space=sflag, size = 0x4, scoped, tag = 'scoped memory for tpu_custom_call.1']
    #allocation8 [shape = 'u8[1024]{0}', space=vmem, size = 0x400, scoped, tag = 'output window, operand 0, single buffered']
    %9 = vsyncpa [#allocation4], 0
    %10 = vsyncpa [#allocation7], 0
    %11 = vsyncpa [#allocation5], 0
    // Predicated region
    $region2: #{tpu_custom_call.1} parent=1 // pred_check
      _
    $region3: #{tpu_custom_call.1} parent=1 // pred_check_branch
      %13 = sbr.rel (0) target = $region5
    $region4: #{tpu_custom_call.1} parent=1 // pred_region
      %15 = vsyncadd [#allocation4], 0
      %s17 = sshll.u32 %s0, 4
      %s18 = int_to_ptr.hbm [resolvable:$true] %s17
      %s19 = sshll.u32 [#allocation3], 4
      %s20 = int_to_ptr.vmem [resolvable:$true] %s19
      %22 = dma.hbm_to_vmem [thread:$0]  %s18, 32, %s20, [#allocation4]
    $region5: #{tpu_custom_call.1} parent=1 // pred_fallthru
      _
    // Predicated region
    $region6: #{tpu_custom_call.1} parent=1 // pred_check
      _
    $region7: #{tpu_custom_call.1} parent=1 // pred_check_branch
      %24 = sbr.rel (0) target = $region9
    $region8: #{tpu_custom_call.1} parent=1 // pred_region
      %26 = vsyncadd [#allocation7], 0
      %s27 = sshll.u32 %s1, 4
      %s28 = int_to_ptr.hbm [resolvable:$true] %s27
      %s29 = sshll.u32 [#allocation6], 4
      %s30 = int_to_ptr.vmem [resolvable:$true] %s29
      %35 = dma.hbm_to_vmem [thread:$0]  %s28, 1024, %s30, [#allocation7], 128, 128, 8
    $region9: #{tpu_custom_call.1} parent=1 // pred_fallthru
      _
    // Predicated region
    $region10: #{tpu_custom_call.1} parent=1 // pred_check
      _
    $region11: #{tpu_custom_call.1} parent=1 // pred_check_branch
      %37 = sbr.rel (0) target = $region13
    $region12: #{tpu_custom_call.1} parent=1 // pred_region
      _
    $region13: #{tpu_custom_call.1} parent=1 // pred_fallthru
      _
    // Predicated region
    $region14: #{tpu_custom_call.1} parent=1 // pred_check
      _
    $region15: #{tpu_custom_call.1} parent=1 // pred_check_branch
      %39 = sbr.rel (0) target = $region17
    $region16: #{tpu_custom_call.1} parent=1 // pred_region
      _
    $region17: #{tpu_custom_call.1} parent=1 // pred_fallthru
      _
    // Predicated region
    $region18: #{tpu_custom_call.1} parent=1 // pred_check
      _
    $region19: #{tpu_custom_call.1} parent=1 // pred_check_branch
      %41 = sbr.rel (0) target = $region21
    $region20: #{tpu_custom_call.1} parent=1 // pred_region
      %43 = dma.done [#allocation4], 32
    $region21: #{tpu_custom_call.1} parent=1 // pred_fallthru
      _
    // Predicated region
    $region22: #{tpu_custom_call.1} parent=1 // pred_check
      _
    $region23: #{tpu_custom_call.1} parent=1 // pred_check_branch
      %45 = sbr.rel (0) target = $region25
    $region24: #{tpu_custom_call.1} parent=1 // pred_region
      %47 = dma.done [#allocation7], 1024
    $region25: #{tpu_custom_call.1} parent=1 // pred_fallthru
      _
    %p48 = scmp.eq.s32.totalorder 0, 0
    // Predicated region
    $region26: #{tpu_custom_call.1} parent=1 // pred_check
      %p49 = pneg %p48
    $region27: #{tpu_custom_call.1} parent=1 // pred_check_branch
      %51 = sbr.rel (%p49) target = $region29
    $region28: #{tpu_custom_call.1} parent=1 // pred_region
      %vm52 = vcmask 517120
      %53 = vst.msk [vmem:[#allocation2] sm:$0x3] %vm52, 0.0
    $region29: #{tpu_custom_call.1} parent=1 // pred_fallthru
      _
    %v54 = vld [vmem:[#allocation2] sm:$0x3]
    %v55 = vld [vmem:[#allocation3] sm:$0x3]
    %v56 = vld [vmem:[#allocation6] sm:$0xff]
    %v57 = vld [vmem:[#allocation6 + $0x8] sm:$0xff]
    %v58 = vld [vmem:[#allocation6 + $0x10] sm:$0xff]
    %v59 = vld [vmem:[#allocation6 + $0x18] sm:$0xff]
    %v60 = vld [vmem:[#allocation6 + $0x20] sm:$0xff]
    %v61 = vld [vmem:[#allocation6 + $0x28] sm:$0xff]
    %v62 = vld [vmem:[#allocation6 + $0x30] sm:$0xff]
    %v63 = vld [vmem:[#allocation6 + $0x38] sm:$0xff]
    %vm64 = vcmask 523264
    %v66 = vsel %vm64, %v55, 0
    %68 = vmatpush.msra.mxu0 0.0
    %69 = vmatpush.msra.mxu0 0.0
    %70 = vmatpush.msra.mxu0 0.0
    %71 = vmatpush.msra.mxu0 0.0
    %72 = vmatpush.msra.mxu0 0.0
    %73 = vmatpush.msra.mxu0 0.0
    %74 = vmatpush.msra.mxu0 0.0
    %75 = vmatpush.msra.mxu0 0.0
    %76 = vmatpush.msra.mxu0 %v63
    %77 = vmatpush.msra.mxu0 %v62
    %78 = vmatpush.msra.mxu0 %v61
    %79 = vmatpush.msra.mxu0 %v60
    %80 = vmatpush.msra.mxu0 %v59
    %81 = vmatpush.msra.mxu0 %v58
    %82 = vmatpush.msra.mxu0 %v57
    %83 = vmatpush.msra.mxu0 %v56
    %84 = vmatmul.f32.gmra.mxu0 %v66
    %v85 = vpop.f32.mrf.mxu0
    %v86 = vadd.f32 0.0, %v85
    %87 = vdwg.mxu0
    %v88 = vadd.f32 %v54, %v86
    %vm89 = vcmask 517120
    %90 = vst.msk [vmem:[#allocation2] sm:$0x3] %vm89, %v88
    // Predicated region
    $region30: #{tpu_custom_call.1} parent=1 // pred_check
      %p91 = pneg %p48
    $region31: #{tpu_custom_call.1} parent=1 // pred_check_branch
      %93 = sbr.rel (%p91) target = $region33
    $region32: #{tpu_custom_call.1} parent=1 // pred_region
      %v94 = vld [vmem:[#allocation2] sm:$0x3]
      %v95 = vld [vmem:[%s2] sm:$0x1]
      %v97 = vperm.slane %v95, 0
      %v99 = vmul.f32 %v94, %v97
      %v100 = vld [vmem:[%s3] sm:$0x1]
      %v102 = vperm.slane %v100, 0
      %v104 = vadd.f32 %v99, %v102
      %v105 = vmax.f32 %v104, 0.0
      %106 = vst.msk [vmem:[#allocation8] sm:$0x3] %vm89, %v105
    $region33: #{tpu_custom_call.1} parent=1 // pred_fallthru
      _
    // Predicated region
    $region34: #{tpu_custom_call.1} parent=1 // pred_check
      _
    $region35: #{tpu_custom_call.1} parent=1 // pred_check_branch
      %108 = sbr.rel (0) target = $region37
    $region36: #{tpu_custom_call.1} parent=1 // pred_region
      %110 = vsyncadd [#allocation5], 0
      %s112 = sshll.u32 [#allocation8], 4
      %s113 = int_to_ptr.vmem [resolvable:$true] %s112
      %s114 = sshll.u32 %s4, 4
      %s115 = int_to_ptr.hbm [resolvable:$true] %s114
      %117 = dma.vmem_to_hbm [thread:$0]  %s113, 32, %s115, [#allocation5]
    $region37: #{tpu_custom_call.1} parent=1 // pred_fallthru
      _
    // Predicated region
    $region38: #{tpu_custom_call.1} parent=1 // pred_check
      _
    $region39: #{tpu_custom_call.1} parent=1 // pred_check_branch
      %119 = sbr.rel (0) target = $region41
    $region40: #{tpu_custom_call.1} parent=1 // pred_region
      %121 = dma.done [#allocation5], 32
    $region41: #{tpu_custom_call.1} parent=1 // pred_fallthru
      _
    %122 = vsyncpa [#allocation4], 1
    %123 = vsyncpa [#allocation7], 1
    %124 = vsyncpa [#allocation5], 1

</llo_original>
